<compile_context>
chip_gen: v7x
topology: tpu7x:2x2x1
jax: 0.10.0
libtpu: 0.0.40
codegen_flags: <defaults>
</compile_context>

<pallas_src>
import functools

import jax
import jax.numpy as jnp
from jax import lax
from jax.experimental import pallas as pl
from jax.experimental.pallas import tpu as pltpu


# Matmul-operand dtype knob.  jnp.bfloat16 roughly doubles MXU throughput and
# halves VMEM bytes for the adj tiles, but the 3-layer chained GNN then drifts
# past the 1e-4 self-check, so the default stays f32.  Accumulation is always
# f32 (preferred_element_type).
MATMUL_DTYPE = jnp.float32

# Compiler params for the adj-streaming kernels: reduction axis "arbitrary",
# independent axes "parallel" (megacore sharding on v7x).  32 MiB scoped VMEM
# is <= physical on every generation (v7x has only 64 MiB) and comfortably
# holds the 1024-wide double-buffered tiles.
_VMEM_LIMIT = 32 * 1024 * 1024
_ADJ_KERNEL_PARAMS = pltpu.CompilerParams(
    dimension_semantics=("parallel", "parallel", "arbitrary"),
    vmem_limit_bytes=_VMEM_LIMIT,
)


def _pick_tile(n, prefs=(1024, 512, 256, 128)):
    """Largest tile from `prefs` that evenly divides n; fall back to n itself.

    Tiles are multiples of 128 (lane-dense stores, (8,128) block constraint).
    A 1024x1024 f32 adj tile is 4 MiB -> 8 MiB double-buffered, comfortably
    inside the 32 MiB scoped limit on v5e/v6e/v7x.
    # TODO(synk): pad N up to a tile multiple for graphs whose N has no
    # 128-multiple divisor (fallback tile=N would force whole-array residency).
    """
    for t in prefs:
        if n >= t and n % t == 0:
            return t
    return n


# ---------------------------------------------------------------------------
# Kernel 1: one IGAE GNN layer over all views:
#   out[v] = adj[v] @ act(h[v] @ W)
# grid = (n_views, N/tm, N/tk); the (tm, d_out) output block stays resident in
# VMEM across the k axis and is used directly as the f32 accumulator.
# ---------------------------------------------------------------------------
def _gnn_layer_kernel(h_ref, adj_ref, w_ref, out_ref, *, act):
    k = pl.program_id(2)

    @pl.when(k == 0)
    def _init():
        out_ref[...] = jnp.zeros_like(out_ref)

    # s = act(h_k @ W) is recomputed per row-tile i; it is a tiny (tk, d_out)
    # matmul, far cheaper than an extra HBM round trip for the intermediate.
    h = h_ref[...].astype(MATMUL_DTYPE)
    s = jnp.dot(h, w_ref[...].astype(MATMUL_DTYPE),
                preferred_element_type=jnp.float32)
    if act:
        s = jnp.tanh(s)
    out_ref[...] += jnp.dot(adj_ref[...].astype(MATMUL_DTYPE),
                            s.astype(MATMUL_DTYPE),
                            preferred_element_type=jnp.float32)


def gnn_layer(h, adj, w, act, *, tm=None, tk=None):
    """h: (N, d_in) shared across views, or (n_views, N, d_in) per-view."""
    n_views, n, _ = adj.shape
    d_in, d_out = w.shape
    tm = tm or _pick_tile(n)
    tk = tk or _pick_tile(n)

    if h.ndim == 2:   # encoder layer 1: x shared by all views
        h_spec = pl.BlockSpec((tk, d_in), lambda v, i, k: (k, 0))
    else:             # per-view hidden state
        h_spec = pl.BlockSpec((None, tk, d_in), lambda v, i, k: (v, k, 0))

    return pl.pallas_call(
        functools.partial(_gnn_layer_kernel, act=act),
        out_shape=jax.ShapeDtypeStruct((n_views, n, d_out), jnp.float32),
        grid_spec=pltpu.PrefetchScalarGridSpec(
            num_scalar_prefetch=0,
            grid=(n_views, n // tm, n // tk),
            in_specs=[
                h_spec,
                pl.BlockSpec((None, tm, tk), lambda v, i, k: (v, i, k)),
                pl.BlockSpec((d_in, d_out), lambda v, i, k: (0, 0)),
            ],
            out_specs=pl.BlockSpec((None, tm, d_out),
                                   lambda v, i, k: (v, i, 0)),
        ),
        compiler_params=_ADJ_KERNEL_PARAMS,
    )(h, adj, w)


def igae_stack(h, adj, ws, acts):
    # Each GNN layer needs the full previous-layer output (adj mixes all rows),
    # so the three layers are three gridded calls; the (N, <=64) intermediates
    # are negligible HBM traffic next to the (N, N) adj streaming.
    for w, act in zip(ws, acts):
        h = gnn_layer(h, adj, w, act)
    return h


# ---------------------------------------------------------------------------
# Kernel 2: A_hat[v] = sigmoid(Xhat[v] @ Xhat[v].T) + sigmoid(Z[v] @ Z[v].T)
# tiled over the (N, N) output with lane-dense (tm, tn) blocks.
# ---------------------------------------------------------------------------
def _a_hat_kernel(zi_ref, zj_ref, xi_ref, xj_ref, out_ref):
    nt = (((1,), (1,)), ((), ()))  # contract feature dim: A @ B.T, no transpose
    zi = zi_ref[...].astype(MATMUL_DTYPE)
    zj = zj_ref[...].astype(MATMUL_DTYPE)
    xi = xi_ref[...].astype(MATMUL_DTYPE)
    xj = xj_ref[...].astype(MATMUL_DTYPE)
    en = jax.nn.sigmoid(
        lax.dot_general(zi, zj, nt, preferred_element_type=jnp.float32))
    de = jax.nn.sigmoid(
        lax.dot_general(xi, xj, nt, preferred_element_type=jnp.float32))
    out_ref[...] = de + en


def a_hat(z, xhat, *, tm=None, tn=None):
    n_views, n, dz = z.shape
    dx = xhat.shape[-1]
    tm = tm or _pick_tile(n)
    tn = tn or _pick_tile(n)
    return pl.pallas_call(
        _a_hat_kernel,
        out_shape=jax.ShapeDtypeStruct((n_views, n, n), jnp.float32),
        grid_spec=pltpu.PrefetchScalarGridSpec(
            num_scalar_prefetch=0,
            grid=(n_views, n // tm, n // tn),
            in_specs=[
                pl.BlockSpec((None, tm, dz), lambda v, i, j: (v, i, 0)),
                pl.BlockSpec((None, tn, dz), lambda v, i, j: (v, j, 0)),
                pl.BlockSpec((None, tm, dx), lambda v, i, j: (v, i, 0)),
                pl.BlockSpec((None, tn, dx), lambda v, i, j: (v, j, 0)),
            ],
            out_specs=pl.BlockSpec((None, tm, tn), lambda v, i, j: (v, i, j)),
        ),
        compiler_params=pltpu.CompilerParams(
            dimension_semantics=("parallel", "parallel", "parallel"),
            vmem_limit_bytes=_VMEM_LIMIT,
        ),
    )(z, z, xhat, xhat)


# ---------------------------------------------------------------------------
# Kernel 3 (fused): S = S_net(concat Z)  and  q = student_t(S, clusters)
# One row-tiled pallas_call producing both outputs (S never round-trips HBM
# between the MLP and the soft assignment).
#   dist = ||s||^2 + ||c||^2 - 2 s @ c.T   (MXU instead of (N,K,d) broadcast)
# ---------------------------------------------------------------------------
def _make_snet_q_kernel(v):
    power = (v + 1.0) / 2.0

    def kernel(x_ref, w1, b1, w2, b2, w3, b3, w4, b4, w5, b5,
               c_ref, csq_ref, s_out_ref, q_out_ref):
        h = x_ref[...]
        for w, b in ((w1, b1), (w2, b2), (w3, b3), (w4, b4)):
            h = jax.nn.sigmoid(
                jnp.dot(h, w[...], preferred_element_type=jnp.float32) + b[...])
        s = jnp.dot(h, w5[...], preferred_element_type=jnp.float32) + b5[...]
        s_out_ref[...] = s

        c = c_ref[...]                                   # (K, d)
        s_sq = jnp.sum(s * s, axis=1, keepdims=True)     # (tm, 1)
        cross = lax.dot_general(s, c, (((1,), (1,)), ((), ())),
                                preferred_element_type=jnp.float32)  # (tm, K)
        dist = jnp.maximum(s_sq + csq_ref[...] - 2.0 * cross, 0.0)
        q = 1.0 / (1.0 + dist / v)
        if power != 1.0:   # skip the pow entirely when exponent == 1 (v=1.0)
            q = q ** power
        q_out_ref[...] = q / jnp.sum(q, axis=1, keepdims=True)

    return kernel


def snet_q_forward(x, mlp_params, clusters, v=1.0, *, tm=None):
    # mlp_params: list of (w (in,out), b (1,out)) for fc1..fc5
    n, in_dim = x.shape
    out_dim = mlp_params[-1][0].shape[1]
    k = clusters.shape[0]
    tm = tm or _pick_tile(n)
    c_sq = jnp.sum(clusters * clusters, axis=1, keepdims=True).T   # (1, K)

    flat = []
    in_specs = [pl.BlockSpec((tm, in_dim), lambda i: (i, 0))]
    for w, b in mlp_params:
        flat.extend([w, b])
        in_specs.append(pl.BlockSpec(w.shape, lambda i: (0, 0)))
        in_specs.append(pl.BlockSpec(b.shape, lambda i: (0, 0)))
    in_specs.append(pl.BlockSpec(clusters.shape, lambda i: (0, 0)))
    in_specs.append(pl.BlockSpec((1, k), lambda i: (0, 0)))

    return pl.pallas_call(
        _make_snet_q_kernel(v),
        out_shape=(jax.ShapeDtypeStruct((n, out_dim), jnp.float32),
                   jax.ShapeDtypeStruct((n, k), jnp.float32)),
        grid_spec=pltpu.PrefetchScalarGridSpec(
            num_scalar_prefetch=0,
            grid=(n // tm,),
            in_specs=in_specs,
            out_specs=[pl.BlockSpec((tm, out_dim), lambda i: (i, 0)),
                       pl.BlockSpec((tm, k), lambda i: (i, 0))],
        ),
        compiler_params=pltpu.CompilerParams(
            dimension_semantics=("parallel",)),
    )(x, *flat, clusters, c_sq)


# ---------------------------------------------------------------------------
# Parameter construction (deterministic, xavier-style)
# ---------------------------------------------------------------------------
def _xavier(key, shape):
    fan_in, fan_out = shape[0], shape[1]
    scale = jnp.sqrt(2.0 / (fan_in + fan_out))
    return scale * jax.random.normal(key, shape, dtype=jnp.float32)


def init_diagc_params(key, x_dim, n_input, n_clusters,
                      enc1, enc2, enc3, n_views):
    keys = jax.random.split(key, 16)
    params = {}
    params["enc_w"] = [
        _xavier(keys[0], (x_dim, enc1)),
        _xavier(keys[1], (enc1, enc2)),
        _xavier(keys[2], (enc2, enc3)),
    ]
    params["dec_w"] = [
        _xavier(keys[3], (enc3, enc2)),
        _xavier(keys[4], (enc2, enc1)),
        _xavier(keys[5], (enc1, n_input)),
    ]
    hid = enc3
    dims = [(n_views * enc3, hid), (hid, 2 * hid), (2 * hid, hid),
            (hid, hid), (hid, hid)]
    mlp = []
    for i, (di, do) in enumerate(dims):
        w = _xavier(keys[6 + i], (di, do))          # stored as (in, out) = W.T
        b = jnp.zeros((1, do), dtype=jnp.float32)
        mlp.append((w, b))
    params["mlp"] = mlp
    params["cluster"] = _xavier(keys[12], (n_clusters, enc3))
    return params


# ---------------------------------------------------------------------------
# DIAGC forward
# ---------------------------------------------------------------------------
def diagc_forward(params, x, adj, v=1.0):
    n_views, n, _ = adj.shape
    # 1) encoder: all views in one gridded call per GNN layer
    Z = igae_stack(x, adj, params["enc_w"], acts=(True, True, False))
    # 2) fused embedding + soft assignment:
    #    S = MLP(concat_v Z[v]),  q = student_t(S, clusters)  (single kernel)
    enc3 = Z.shape[-1]
    z_cat = jnp.transpose(Z, (1, 0, 2)).reshape(n, n_views * enc3)
    S, q = snet_q_forward(z_cat, params["mlp"], params["cluster"], v=v)
    # 3) decoder + reconstruction  A_hat[v] = s(Xhat Xhat^T) + s(Z Z^T)
    Xhat = igae_stack(Z, adj, params["dec_w"], acts=(True, True, True))
    A = a_hat(Z, Xhat)
    Z_list = [Z[i] for i in range(n_views)]
    A_list = [A[i] for i in range(n_views)]
    return Z_list, A_list, S, q


# ---------------------------------------------------------------------------
# Pure-JAX reference (faithful to the PyTorch math) for correctness checking
# ---------------------------------------------------------------------------
def diagc_forward_ref(params, x, adj, n_views, v=1.0):
    def stack(h, a, ws, acts):
        for w, act in zip(ws, acts):
            s = h @ w
            if act:
                s = jnp.tanh(s)
            h = a @ s
        return h

    Z = [stack(x, adj[i], params["enc_w"], (True, True, False))
         for i in range(n_views)]
    h = jnp.concatenate(Z, axis=1)
    for i, (w, b) in enumerate(params["mlp"]):
        h = h @ w + b
        if i < 4:
            h = jax.nn.sigmoid(h)
    S = h
    A_hat = []
    for i in range(n_views):
        xhat = stack(Z[i], adj[i], params["dec_w"], (True, True, True))
        A_hat.append(jax.nn.sigmoid(xhat @ xhat.T) +
                     jax.nn.sigmoid(Z[i] @ Z[i].T))
    dist = jnp.sum((S[:, None, :] - params["cluster"][None, :, :]) ** 2, axis=2)
    q = 1.0 / (1.0 + dist / v)
    q = q ** ((v + 1.0) / 2.0)
    q = q / jnp.sum(q, axis=1, keepdims=True)
    return Z, A_hat, S, q


if __name__ == "__main__":
    # small, deterministic problem (N chosen so the 128-wide tiling/grids are
    # actually exercised: grid = (2 views, 3, 3) on the adj contractions)
    N = 384          # nodes
    x_dim = 64       # input feature dim (== n_input for reconstruction)
    n_input = 64
    n_views = 2
    n_clusters = 4
    enc1, enc2, enc3 = 32, 16, 8

    key = jax.random.PRNGKey(0)
    kx, kadj, kp = jax.random.split(key, 3)

    x = jax.random.normal(kx, (N, x_dim), dtype=jnp.float32)
    adj_raw = jax.random.uniform(kadj, (n_views, N, N), dtype=jnp.float32)
    adj = adj_raw / jnp.sum(adj_raw, axis=-1, keepdims=True)  # row-normalized

    params = init_diagc_params(kp, x_dim, n_input, n_clusters,
                               enc1, enc2, enc3, n_views)

    Z, A_hat, S, q = diagc_forward(params, x, adj)
    jax.block_until_ready((Z, A_hat, S, q))

    # sanity check against pure-JAX reference
    Zr, Ar, Sr, qr = diagc_forward_ref(params, x, adj, n_views)
    for a, b in zip(Z, Zr):
        assert jnp.allclose(a, b, atol=1e-4), "Z mismatch"
    for a, b in zip(A_hat, Ar):
        assert jnp.allclose(a, b, atol=1e-4), "A_hat mismatch"
    assert jnp.allclose(S, Sr, atol=1e-4), "S mismatch"
    assert jnp.allclose(q, qr, atol=1e-4), "q mismatch"

    print("KERNEL_OK")
</pallas_src>

<mosaic_0001>
module attributes {stable_mosaic.version = 11 : i64} {
  func.func @_gnn_layer_kernel(%arg0: i32, %arg1: i32, %arg2: i32, %arg3: memref<128x64xf32, #tpu.memory_space<vmem>>, %arg4: memref<1x128x128xf32, #tpu.memory_space<vmem>>, %arg5: memref<64x32xf32, #tpu.memory_space<vmem>>, %arg6: memref<1x128x32xf32, #tpu.memory_space<vmem>>) attributes {dimension_semantics = [#tpu.dimension_semantics<parallel>, #tpu.dimension_semantics<parallel>, #tpu.dimension_semantics<arbitrary>], iteration_bounds = array<i64: 2, 3, 3>, scalar_prefetch = 0 : i64, scratch_operands = 0 : i64, tpu.core_type = #tpu.core_type<tc>, window_params = [{transform_indices = @transform_0, window_bounds = array<i64: 128, 64>}, {transform_indices = @transform_1, window_bounds = array<i64: 1, 128, 128>}, {pipeline_mode = #tpu.pipeline_mode<synchronous>, transform_indices = @transform_2, window_bounds = array<i64: 64, 32>}, {transform_indices = @transform_3, window_bounds = array<i64: 1, 128, 32>}]} {
    %c0_i32 = arith.constant 0 : i32
    %0 = arith.cmpi eq, %arg2, %c0_i32 : i32
    %1 = arith.extui %0 : i1 to i32
    %c0_i32_0 = arith.constant 0 : i32
    %2 = arith.cmpi ne, %1, %c0_i32_0 : i32
    scf.if %2 {
      %cst_14 = arith.constant 0.000000e+00 : f32
      %16 = vector.broadcast %cst_14 : f32 to vector<128x32xf32>
      %c0_15 = arith.constant 0 : index
      %c0_16 = arith.constant 0 : index
      %c0_17 = arith.constant 0 : index
      %17 = vector.load %arg6[%c0_15, %c0_16, %c0_17] : memref<1x128x32xf32, #tpu.memory_space<vmem>>, vector<1x128x32xf32>
      %18 = vector.shape_cast %17 : vector<1x128x32xf32> to vector<128x32xf32>
      %19 = vector.shape_cast %16 : vector<128x32xf32> to vector<1x128x32xf32>
      tpu.vector_store %arg6[%c0_15, %c0_16, %c0_17], %19 {strides = array<i32>} : memref<1x128x32xf32, #tpu.memory_space<vmem>>, vector<1x128x32xf32>,
    } else {
    }
    %c0 = arith.constant 0 : index
    %c0_1 = arith.constant 0 : index
    %3 = vector.load %arg3[%c0, %c0_1] : memref<128x64xf32, #tpu.memory_space<vmem>>, vector<128x64xf32>
    %c0_2 = arith.constant 0 : index
    %c0_3 = arith.constant 0 : index
    %4 = vector.load %arg5[%c0_2, %c0_3] : memref<64x32xf32, #tpu.memory_space<vmem>>, vector<64x32xf32>
    %cst = arith.constant dense<0.000000e+00> : vector<128x32xf32>
    %5 = tpu.matmul %3, %4, %cst {dimension_numbers = #tpu.dot_dimension_numbers<[1], [0], [0], [1], [0, 0, 1, 1], [], []>} : vector<128x64xf32>, vector<64x32xf32>, vector<128x32xf32> -> vector<128x32xf32>
    %6 = math.tanh %5 : vector<128x32xf32>
    %c0_4 = arith.constant 0 : index
    %c0_5 = arith.constant 0 : index
    %c0_6 = arith.constant 0 : index
    %7 = vector.load %arg6[%c0_4, %c0_5, %c0_6] : memref<1x128x32xf32, #tpu.memory_space<vmem>>, vector<1x128x32xf32>
    %8 = vector.shape_cast %7 : vector<1x128x32xf32> to vector<128x32xf32>
    %c0_7 = arith.constant 0 : index
    %c0_8 = arith.constant 0 : index
    %c0_9 = arith.constant 0 : index
    %9 = vector.load %arg4[%c0_7, %c0_8, %c0_9] : memref<1x128x128xf32, #tpu.memory_space<vmem>>, vector<1x128x128xf32>
    %10 = vector.shape_cast %9 : vector<1x128x128xf32> to vector<128x128xf32>
    %cst_10 = arith.constant dense<0.000000e+00> : vector<128x32xf32>
    %11 = tpu.matmul %10, %6, %cst_10 {dimension_numbers = #tpu.dot_dimension_numbers<[1], [0], [0], [1], [0, 0, 1, 1], [], []>} : vector<128x128xf32>, vector<128x32xf32>, vector<128x32xf32> -> vector<128x32xf32>
    %12 = arith.addf %8, %11 : vector<128x32xf32>
    %c0_11 = arith.constant 0 : index
    %c0_12 = arith.constant 0 : index
    %c0_13 = arith.constant 0 : index
    %13 = vector.load %arg6[%c0_11, %c0_12, %c0_13] : memref<1x128x32xf32, #tpu.memory_space<vmem>>, vector<1x128x32xf32>
    %14 = vector.shape_cast %13 : vector<1x128x32xf32> to vector<128x32xf32>
    %15 = vector.shape_cast %12 : vector<128x32xf32> to vector<1x128x32xf32>
    tpu.vector_store %arg6[%c0_11, %c0_12, %c0_13], %15 {strides = array<i32>} : memref<1x128x32xf32, #tpu.memory_space<vmem>>, vector<1x128x32xf32>,
    return
  }
  func.func @transform_0(%arg0: i32, %arg1: i32, %arg2: i32) -> (i32, i32) {
    %c0_i32 = arith.constant 0 : i32
    %c0_i32_0 = arith.constant 0 : i32
    return %arg2, %c0_i32 : i32, i32
  }
  func.func @transform_1(%arg0: i32, %arg1: i32, %arg2: i32) -> (i32, i32, i32) {
    %c0_i32 = arith.constant 0 : i32
    return %arg0, %arg1, %arg2 : i32, i32, i32
  }
  func.func @transform_2(%arg0: i32, %arg1: i32, %arg2: i32) -> (i32, i32) {
    %c0_i32 = arith.constant 0 : i32
    %c0_i32_0 = arith.constant 0 : i32
    %c0_i32_1 = arith.constant 0 : i32
    return %c0_i32, %c0_i32_0 : i32, i32
  }
  func.func @transform_3(%arg0: i32, %arg1: i32, %arg2: i32) -> (i32, i32, i32) {
    %c0_i32 = arith.constant 0 : i32
    %c0_i32_0 = arith.constant 0 : i32
    return %arg0, %arg1, %c0_i32 : i32, i32, i32
  }
}

</mosaic_0001>

<llo_original>
// kernel: tpu_custom_call.1
$region0: #{tpu_custom_call.1}
  #allocation0 [shape = 'u32[]', space=smem, size = 0x4, offset = 0x4, fixed_abs, tag = 'smem constant byte address 0x4 - core index']
  #allocation1 [shape = 'u32[144,128]{1,0:T(1,128)}', space=vmem, size = 0x12000, scoped, tag = 'internal scratch']
  %s0 = inlined_call_operand.vmem [shape: f32[384,64], index: 0, kind: input, shape index: {}]
  %s1 = inlined_call_operand.hbm [shape: f32[2,384,384], index: 1, kind: input, shape index: {}]
  %s2 = inlined_call_operand.vmem [shape: f32[64,32], index: 2, kind: input, shape index: {}]
  %s3 = inlined_call_operand.vmem [shape: f32[2,384,32], index: 3, kind: output, shape index: {}]
  %s4 = sld [smem:[#allocation0]]
  $region53: #{tpu_custom_call.1} parent=0
    _
  %s6 = ssub.s32 1, %s4
  %s7 = scalar_select 0, %s6, %s4
  $region1: #{tpu_custom_call.1} parent=0
    #allocation2 [shape = 'u8[131072]{0}', space=vmem, size = 0x20000, scoped, tag = 'input window, operand 1']
    #allocation3 [shape = 's32[2]{0}', space=sflag, size = 0x8, scoped, tag = 'scoped memory for tpu_custom_call.1']
    %8 = vsyncpa [#allocation3], 0
    %s9 = scalar_lea.sflag [#allocation3], 1
    %10 = vsyncpa %s9, 0
    loop: start=0, step=1, limit=20
    $region2: #{tpu_custom_call.1} parent=1 // loop_pre_header
      _
    $region3: #{tpu_custom_call.1} parent=1 // loop_header
      %s12 = sphi 0, %s16
      %p13 = scmp.ge.s32.totalorder %s12, 20
      %s19 = sphi 0, %s38
      %s20 = sphi 0, %s34
      %s21 = sphi 0, %s30
      %s22 = sphi 0, %s19
      %s23 = sphi 0, %s20
      %s24 = sphi 0, %s21
      %s25 = sphi 0, %s22
      %s26 = sphi 0, %s23
      %s27 = sphi 0, %s24
      %s41 = sphi 0, %s43
      %s44 = sphi 0, %s41
      %s45 = sphi 0, %s44
      %s61 = sphi 0, %s45
      %s71 = sphi 0, %s73
      %s74 = sphi 0, %s71
      %s75 = sphi 0, %s74
      %s91 = sphi 0, %s75
      %s95 = sphi 0, %s95
      %s97 = sphi 0, %s95
      %s98 = sphi 0, %s97
      %s112 = sphi 0, %s98
      %s120 = sphi 0, %s122
      %s123 = sphi 0, %s120
      %s124 = sphi 0, %s123
      %s140 = sphi 0, %s124
    $region4: #{tpu_custom_call.1} parent=1 // loop_header_branch
      %15 = sbr.rel (%p13) target = $region8
    $region5: #{tpu_custom_call.1} parent=1 // loop_body
      %s17 = ssub.s32 %s12, 1
      %s18 = ssub.s32 %s12, 2
      %s28 = sadd.s32 1, %s21
      %p29 = scmp.ge.s32.totalorder %s28, 3
      %s30 = scalar_select %p29, 0, %s28
      %s31 = sadd.s32 1, %s20
      %s32 = scalar_select %p29, %s31, %s20
      %p33 = scmp.ge.s32.totalorder %s32, 3
      %s34 = scalar_select %p33, 0, %s32
      %s35 = sadd.s32 1, %s19
      %s36 = scalar_select %p33, %s35, %s19
      %p37 = scmp.ge.s32.totalorder %s36, 2
      %s38 = scalar_select %p37, 0, %s36
      %s39 = ssub.s32 %s21, %s30
      %p40 = scmp.eq.s32.totalorder %s39, 0
      %s42 = sadd.s32 %s41, 1
      %s43 = scalar_select %p40, %s41, %s42
      %p46 = pneg %p40
      %p47 = scmp.eq.s32.totalorder %s12, 17
      %p48 = por %p46, %p47
      %p49 = scmp.ne.s32.totalorder %s41, %s44
      %p50 = scmp.eq.s32.totalorder %s12, 0
      %p51 = por %p49, %p50
      %p52 = scmp.ne.s32.totalorder %s41, %s44
      %p53 = scmp.eq.s32.totalorder %s17, 17
      %p54 = por %p52, %p53
      %p55 = scmp.ne.s32.totalorder %s44, %s45
      %p56 = scmp.eq.s32.totalorder %s17, 0
      %p57 = por %p55, %p56
      %p58 = scmp.ne.s32.totalorder %s44, %s45
      %p59 = scmp.eq.s32.totalorder %s18, 17
      %p60 = por %p58, %p59
      %p62 = scmp.ne.s32.totalorder %s45, %s61
      %p63 = scmp.eq.s32.totalorder %s18, 0
      %p64 = por %p62, %p63
      %s65 = ssub.s32 %s19, %s38
      %s66 = ssub.s32 %s20, %s34
      %s67 = sor.u32 %s65, %s66
      %s68 = ssub.s32 %s21, %s30
      %s69 = sor.u32 %s67, %s68
      %p70 = scmp.eq.s32.totalorder %s69, 0
      %s72 = sadd.s32 %s71, 1
      %s73 = scalar_select %p70, %s71, %s72
      %p76 = pneg %p70
      %p77 = scmp.eq.s32.totalorder %s12, 17
      %p78 = por %p76, %p77
      %p79 = scmp.ne.s32.totalorder %s71, %s74
      %p80 = scmp.eq.s32.totalorder %s12, 0
      %p81 = por %p79, %p80
      %p82 = scmp.ne.s32.totalorder %s71, %s74
      %p83 = scmp.eq.s32.totalorder %s17, 17
      %p84 = por %p82, %p83
      %p85 = scmp.ne.s32.totalorder %s74, %s75
      %p86 = scmp.eq.s32.totalorder %s17, 0
      %p87 = por %p85, %p86
      %p88 = scmp.ne.s32.totalorder %s74, %s75
      %p89 = scmp.eq.s32.totalorder %s18, 17
      %p90 = por %p88, %p89
      %p92 = scmp.ne.s32.totalorder %s75, %s91
      %p93 = scmp.eq.s32.totalorder %s18, 0
      %p94 = por %p92, %p93
      %s96 = sadd.s32 %s95, 1
      %p99 = scmp.eq.s32.totalorder %s12, 17
      %p100 = scmp.ne.s32.totalorder %s95, %s97
      %p101 = scmp.eq.s32.totalorder %s12, 0
      %p102 = por %p100, %p101
      %p103 = scmp.ne.s32.totalorder %s95, %s97
      %p104 = scmp.eq.s32.totalorder %s17, 17
      %p105 = por %p103, %p104
      %p106 = scmp.ne.s32.totalorder %s97, %s98
      %p107 = scmp.eq.s32.totalorder %s17, 0
      %p108 = por %p106, %p107
      %p109 = scmp.ne.s32.totalorder %s97, %s98
      %p110 = scmp.eq.s32.totalorder %s18, 17
      %p111 = por %p109, %p110
      %p113 = scmp.ne.s32.totalorder %s98, %s112
      %p114 = scmp.eq.s32.totalorder %s18, 0
      %p115 = por %p113, %p114
      %s116 = ssub.s32 %s19, %s38
      %s117 = ssub.s32 %s20, %s34
      %s118 = sor.u32 %s116, %s117
      %p119 = scmp.eq.s32.totalorder %s118, 0
      %s121 = sadd.s32 %s120, 1
      %s122 = scalar_select %p119, %s120, %s121
      %p125 = pneg %p119
      %p126 = scmp.eq.s32.totalorder %s12, 17
      %p127 = por %p125, %p126
      %p128 = scmp.ne.s32.totalorder %s120, %s123
      %p129 = scmp.eq.s32.totalorder %s12, 0
      %p130 = por %p128, %p129
      %p131 = scmp.ne.s32.totalorder %s120, %s123
      %p132 = scmp.eq.s32.totalorder %s17, 17
      %p133 = por %p131, %p132
      %p134 = scmp.ne.s32.totalorder %s123, %s124
      %p135 = scmp.eq.s32.totalorder %s17, 0
      %p136 = por %p134, %p135
      %p137 = scmp.ne.s32.totalorder %s123, %s124
      %p138 = scmp.eq.s32.totalorder %s18, 17
      %p139 = por %p137, %p138
      %p141 = scmp.ne.s32.totalorder %s124, %s140
      %p142 = scmp.eq.s32.totalorder %s18, 0
      %p143 = por %p141, %p142
      %p144 = scmp.le.s32.totalorder 1, %s12
      %p145 = scmp.lt.s32.totalorder %s12, 19
      %p146 = pnand %p144, %p145
      %p147 = pneg %p146
      // Predicated region
      $region9: #{tpu_custom_call.1} parent=5 // pred_check
        _
      $region10: #{tpu_custom_call.1} parent=5 // pred_check_branch
        %149 = sbr.rel (%p146) target = $region12
      $region11: #{tpu_custom_call.1} parent=5 // pred_region
        %s150 = ssub.s32 %s12, 1
        // Predicated region
        $region13: #{tpu_custom_call.1} parent=11 // pred_check
          %p151 = pneg %p108
        $region14: #{tpu_custom_call.1} parent=11 // pred_check_branch
          %153 = sbr.rel (%p151) target = $region16
        $region15: #{tpu_custom_call.1} parent=11 // pred_region
          _
        $region16: #{tpu_custom_call.1} parent=11 // pred_fallthru
          _
      $region12: #{tpu_custom_call.1} parent=5 // pred_fallthru
        _
      %p154 = scmp.lt.s32.totalorder %s12, 18
      // Predicated region
      $region17: #{tpu_custom_call.1} parent=5 // pred_check
        %p155 = pneg %p154
      $region18: #{tpu_custom_call.1} parent=5 // pred_check_branch
        %157 = sbr.rel (%p155) target = $region20
      $region19: #{tpu_custom_call.1} parent=5 // pred_region
        // Predicated region
        $region21: #{tpu_custom_call.1} parent=19 // pred_check
          %p158 = pneg %p51
        $region22: #{tpu_custom_call.1} parent=19 // pred_check_branch
          %160 = sbr.rel (%p158) target = $region24
        $region23: #{tpu_custom_call.1} parent=19 // pred_region
          %s161 = smul.u32 16, %s21
          %p162 = scmp.lt.s32.totalorder %s161, 47
          %s163 = scalar_select %p162, %s161, 47
          %s164 = smul.addr %s163, 8
          %s165 = scalar_lea.vmem %s0, %s164
          %s166 = smul.u32 16, %s21
        $region24: #{tpu_custom_call.1} parent=19 // pred_fallthru
          _
        // Predicated region
        $region25: #{tpu_custom_call.1} parent=19 // pred_check
          %p167 = pneg %p81
        $region26: #{tpu_custom_call.1} parent=19 // pred_check_branch
          %169 = sbr.rel (%p167) target = $region28
        $region27: #{tpu_custom_call.1} parent=19 // pred_region
          %s170 = sand.u32 %s71, 1
          %s171 = scalar_lea.sflag [#allocation3], %s170
          %s172 = sand.u32 %s71, 1
          %s173 = smul.addr %s172, 128
          %s174 = scalar_lea.vmem [#allocation2], %s173
          %s175 = smul.u32 16, %s20
          %s177 = ssub.s32 2048, 2048
          %178 = vsyncadd %s171, %s177
          %s179 = smul.addr %s175, 3
          %s180 = sadd.s32 %s21, %s179
          %s181 = smul.addr %s19, 144
          %s182 = sadd.s32 %s180, %s181
          %s183 = smul.addr %s182, 128
          %s184 = scalar_lea.hbm %s1, %s183
          %s185 = sshll.u32 %s174, 4
          %s186 = int_to_ptr.vmem [resolvable:$true] %s185
          %191 = dma.hbm_to_vmem [thread:$0]  %s184, 2048, %s186, %s171, 384, 128, 8
        $region28: #{tpu_custom_call.1} parent=19 // pred_fallthru
          _
      $region20: #{tpu_custom_call.1} parent=5 // pred_fallthru
        _
      %p192 = scmp.le.s32.totalorder 1, %s12
      %p193 = scmp.lt.s32.totalorder %s12, 19
      %p194 = pnand %p192, %p193
      %p195 = pneg %p194
      // Predicated region
      $region29: #{tpu_custom_call.1} parent=5 // pred_check
        _
      $region30: #{tpu_custom_call.1} parent=5 // pred_check_branch
        %197 = sbr.rel (%p194) target = $region32
      $region31: #{tpu_custom_call.1} parent=5 // pred_region
        %s198 = ssub.s32 %s12, 1
        %s199 = sand.u32 %s74, 1
        %s200 = scalar_lea.sflag [#allocation3], %s199
        %s201 = sand.u32 %s74, 1
        %s202 = smul.addr %s201, 128
        %s203 = scalar_lea.vmem [#allocation2], %s202
        // Predicated region
        $region33: #{tpu_custom_call.1} parent=31 // pred_check
          %p204 = pneg %p87
        $region34: #{tpu_custom_call.1} parent=31 // pred_check_branch
          %206 = sbr.rel (%p204) target = $region36
        $region35: #{tpu_custom_call.1} parent=31 // pred_region
          %207 = dma.done %s200, 2048
        $region36: #{tpu_custom_call.1} parent=31 // pred_fallthru
          _
        %s208 = smul.u32 16, %s24
        %p209 = scmp.lt.s32.totalorder %s208, 47
        %s210 = scalar_select %p209, %s208, 47
        %s211 = smul.addr %s210, 8
        %s212 = scalar_lea.vmem %s0, %s211
        %p213 = pneg %p57
        %p214 = pneg %p54
        %s215 = sand.u32 %s74, 1
        %s216 = scalar_lea.sflag [#allocation3], %s215
        %s217 = sand.u32 %s74, 1
        %s218 = smul.addr %s217, 128
        %s219 = scalar_lea.vmem [#allocation2], %s218
        %p220 = pneg %p87
        %p221 = pneg %p84
        %p222 = pneg %p108
        %p223 = pneg %p105
        %p224 = pneg %p136
        %p225 = pneg %p133
        %s226 = smul.u32 16, %s23
        %p227 = scmp.lt.s32.totalorder %s22, 1
        %s228 = scalar_select %p227, %s22, 1
        %p229 = scmp.lt.s32.totalorder %s226, 47
        %s230 = scalar_select %p229, %s226, 47
        %s231 = smul.addr %s228, 48
        %s232 = sadd.s32 %s230, %s231
        %s233 = smul.addr %s232, 8
        %s234 = scalar_lea.vmem %s3, %s233
        %s235 = smul.u32 16, %s24
        %p236 = scmp.lt.s32.totalorder %s235, 47
        %s237 = scalar_select %p236, %s235, 47
        %s238 = smul.addr %s237, 8
        %s239 = scalar_lea.vmem %s0, %s238
        %s240 = smul.u32 16, %s24
        %s241 = smul.u32 16, %s23
        %s242 = smul.u32 16, %s23
        %p243 = scmp.lt.s32.totalorder %s22, 1
        %s244 = scalar_select %p243, %s22, 1
        %p245 = scmp.lt.s32.totalorder %s242, 47
        %s246 = scalar_select %p245, %s242, 47
        %s247 = smul.addr %s244, 48
        %s248 = sadd.s32 %s246, %s247
        %s249 = smul.addr %s248, 8
        %s250 = scalar_lea.vmem %s3, %s249
        %s251 = smul.u32 16, %s23
        %p252 = scmp.eq.s32.totalorder %s24, 0
        // Predicated region
        $region37: #{tpu_custom_call.1} parent=31 // pred_check
          %p253 = pneg %p252
        $region38: #{tpu_custom_call.1} parent=31 // pred_check_branch
          %255 = sbr.rel (%p253) target = $region40
        $region39: #{tpu_custom_call.1} parent=31 // pred_region
          %vm256 = vcmask 261120
          %257 = vst.msk [vmem:[%s250] sm:$0xff] %vm256, 0.0
          %258 = vst.msk [vmem:[%s250 + $0x8] sm:$0xff] %vm256, 0.0
          %259 = vst.msk [vmem:[%s250 + $0x10] sm:$0xff] %vm256, 0.0
          %260 = vst.msk [vmem:[%s250 + $0x18] sm:$0xff] %vm256, 0.0
          %261 = vst.msk [vmem:[%s250 + $0x20] sm:$0xff] %vm256, 0.0
          %262 = vst.msk [vmem:[%s250 + $0x28] sm:$0xff] %vm256, 0.0
          %263 = vst.msk [vmem:[%s250 + $0x30] sm:$0xff] %vm256, 0.0
          %264 = vst.msk [vmem:[%s250 + $0x38] sm:$0xff] %vm256, 0.0
          %265 = vst.msk [vmem:[%s250 + $0x40] sm:$0xff] %vm256, 0.0
          %266 = vst.msk [vmem:[%s250 + $0x48] sm:$0xff] %vm256, 0.0
          %267 = vst.msk [vmem:[%s250 + $0x50] sm:$0xff] %vm256, 0.0
          %268 = vst.msk [vmem:[%s250 + $0x58] sm:$0xff] %vm256, 0.0
          %269 = vst.msk [vmem:[%s250 + $0x60] sm:$0xff] %vm256, 0.0
          %270 = vst.msk [vmem:[%s250 + $0x68] sm:$0xff] %vm256, 0.0
          %271 = vst.msk [vmem:[%s250 + $0x70] sm:$0xff] %vm256, 0.0
          %272 = vst.msk [vmem:[%s250 + $0x78] sm:$0xff] %vm256, 0.0
        $region40: #{tpu_custom_call.1} parent=31 // pred_fallthru
          _
        %v273 = vld [vmem:[%s239] sm:$0xff]
        %v274 = vld [vmem:[%s239 + $0x8] sm:$0xff]
        %v275 = vld [vmem:[%s239 + $0x10] sm:$0xff]
        %v276 = vld [vmem:[%s239 + $0x18] sm:$0xff]
        %v277 = vld [vmem:[%s239 + $0x20] sm:$0xff]
        %v278 = vld [vmem:[%s239 + $0x28] sm:$0xff]
        %v279 = vld [vmem:[%s239 + $0x30] sm:$0xff]
        %v280 = vld [vmem:[%s239 + $0x38] sm:$0xff]
        %v281 = vld [vmem:[%s239 + $0x40] sm:$0xff]
        %v282 = vld [vmem:[%s239 + $0x48] sm:$0xff]
        %v283 = vld [vmem:[%s239 + $0x50] sm:$0xff]
        %v284 = vld [vmem:[%s239 + $0x58] sm:$0xff]
        %v285 = vld [vmem:[%s239 + $0x60] sm:$0xff]
        %v286 = vld [vmem:[%s239 + $0x68] sm:$0xff]
        %v287 = vld [vmem:[%s239 + $0x70] sm:$0xff]
        %v288 = vld [vmem:[%s239 + $0x78] sm:$0xff]
        %v289 = vld [vmem:[%s2] sm:$0xff]
        %v290 = vld [vmem:[%s2 + $0x8] sm:$0xff]
        %v291 = vld [vmem:[%s2 + $0x10] sm:$0xff]
        %v292 = vld [vmem:[%s2 + $0x18] sm:$0xff]
        %v293 = vld [vmem:[%s2 + $0x20] sm:$0xff]
        %v294 = vld [vmem:[%s2 + $0x28] sm:$0xff]
        %v295 = vld [vmem:[%s2 + $0x30] sm:$0xff]
        %v296 = vld [vmem:[%s2 + $0x38] sm:$0xff]
        %vm297 = vcmask 523264
        %v299 = vsel %vm297, %v273, 0
        %v302 = vsel %vm297, %v274, 0
        %v305 = vsel %vm297, %v275, 0
        %v308 = vsel %vm297, %v276, 0
        %v311 = vsel %vm297, %v277, 0
        %v314 = vsel %vm297, %v278, 0
        %v317 = vsel %vm297, %v279, 0
        %v320 = vsel %vm297, %v280, 0
        %v323 = vsel %vm297, %v281, 0
        %v326 = vsel %vm297, %v282, 0
        %v329 = vsel %vm297, %v283, 0
        %v332 = vsel %vm297, %v284, 0
        %v335 = vsel %vm297, %v285, 0
        %v338 = vsel %vm297, %v286, 0
        %v341 = vsel %vm297, %v287, 0
        %v344 = vsel %vm297, %v288, 0
        %346 = vmatprep.subr.mxu0 0.0
        %347 = vmatpush1.msra.mxu0 %v289
        %348 = vmatprep.subr.mxu0 0.0
        %349 = vmatpush1.msra.mxu0 %v290
        %350 = vmatprep.subr.mxu0 0.0
        %351 = vmatpush1.msra.mxu0 %v291
        %352 = vmatprep.subr.mxu0 0.0
        %353 = vmatpush1.msra.mxu0 %v292
        %354 = vmatprep.subr.mxu0 0.0
        %355 = vmatpush1.msra.mxu0 %v293
        %356 = vmatprep.subr.mxu0 0.0
        %357 = vmatpush1.msra.mxu0 %v294
        %358 = vmatprep.subr.mxu0 0.0
        %359 = vmatpush1.msra.mxu0 %v295
        %360 = vmatprep.subr.mxu0 0.0
        %361 = vmatpush1.msra.mxu0 %v296
        %362 = vmatprep.subr.mxu0 0.0
        %363 = vmatpush1.msra.mxu0 0.0
        %364 = vmatprep.subr.mxu0 0.0
        %365 = vmatpush1.msra.mxu0 0.0
        %366 = vmatprep.subr.mxu0 0.0
        %367 = vmatpush1.msra.mxu0 0.0
        %368 = vmatprep.subr.mxu0 0.0
        %369 = vmatpush1.msra.mxu0 0.0
        %370 = vmatprep.subr.mxu0 0.0
        %371 = vmatpush1.msra.mxu0 0.0
        %372 = vmatprep.subr.mxu0 0.0
        %373 = vmatpush1.msra.mxu0 0.0
        %374 = vmatprep.subr.mxu0 0.0
        %375 = vmatpush1.msra.mxu0 0.0
        %376 = vmatprep.subr.mxu0 0.0
        %377 = vmatpush1.msra.mxu0 0.0
        %378 = vmatprep.subr.mxu0 0.0
        %379 = vmatpush1.msra.mxu0 0.0
        %380 = vmatprep.subr.mxu0 0.0
        %381 = vmatpush1.msra.mxu0 0.0
        %382 = vmatprep.subr.mxu0 0.0
        %383 = vmatpush1.msra.mxu0 0.0
        %384 = vmatprep.subr.mxu0 0.0
        %385 = vmatpush1.msra.mxu0 0.0
        %386 = vmatprep.subr.mxu0 0.0
        %387 = vmatpush1.msra.mxu0 0.0
        %388 = vmatprep.subr.mxu0 0.0
        %389 = vmatpush1.msra.mxu0 0.0
        %390 = vmatprep.subr.mxu0 0.0
        %391 = vmatpush1.msra.mxu0 0.0
        %392 = vmatprep.subr.mxu0 0.0
        %393 = vmatpush1.msra.mxu0 0.0
        %394 = vmatprep.subr.mxu0 0.0
        %395 = vmatpush1.msra.mxu0 0.0
        %396 = vmatprep.subr.mxu0 0.0
        %397 = vmatpush1.msra.mxu0 0.0
        %398 = vmatprep.subr.mxu0 0.0
        %399 = vmatpush1.msra.mxu0 0.0
        %400 = vmatprep.subr.mxu0 0.0
        %401 = vmatpush1.msra.mxu0 0.0
        %402 = vmatprep.subr.mxu0 0.0
        %403 = vmatpush1.msra.mxu0 0.0
        %404 = vmatprep.subr.mxu0 0.0
        %405 = vmatpush1.msra.mxu0 0.0
        %406 = vmatprep.subr.mxu0 0.0
        %407 = vmatpush1.msra.mxu0 0.0
        %408 = vmatprep.subr.mxu0 0.0
        %409 = vmatpush1.msra.mxu0 0.0
        %410 = vmatprep.mubr.f32.mxu0 0.0
        %411 = vmatmul.mubr.f32.gmra.mrb[0].mxu0 %v299
        %v412 = vpop.f32.mrb[0].mxu0
        %v413 = vadd.f32 0.0, %v412
        %v414 = vpop.f32.mrb[0].mxu0
        %415 = vmatprep.mubr.f32.mxu0 0.0
        %416 = vmatmul.mubr.f32.gmra.mrb[0].mxu0 %v302
        %v417 = vpop.f32.mrb[0].mxu0
        %v418 = vadd.f32 0.0, %v417
        %v419 = vpop.f32.mrb[0].mxu0
        %420 = vmatprep.mubr.f32.mxu0 0.0
        %421 = vmatmul.mubr.f32.gmra.mrb[0].mxu0 %v305
        %v422 = vpop.f32.mrb[0].mxu0
        %v423 = vadd.f32 0.0, %v422
        %v424 = vpop.f32.mrb[0].mxu0
        %425 = vmatprep.mubr.f32.mxu0 0.0
        %426 = vmatmul.mubr.f32.gmra.mrb[0].mxu0 %v308
        %v427 = vpop.f32.mrb[0].mxu0
        %v428 = vadd.f32 0.0, %v427
        %v429 = vpop.f32.mrb[0].mxu0
        %430 = vmatprep.mubr.f32.mxu0 0.0
        %431 = vmatmul.mubr.f32.gmra.mrb[0].mxu0 %v311
        %v432 = vpop.f32.mrb[0].mxu0
        %v433 = vadd.f32 0.0, %v432
        %v434 = vpop.f32.mrb[0].mxu0
        %435 = vmatprep.mubr.f32.mxu0 0.0
        %436 = vmatmul.mubr.f32.gmra.mrb[0].mxu0 %v314
        %v437 = vpop.f32.mrb[0].mxu0
        %v438 = vadd.f32 0.0, %v437
        %v439 = vpop.f32.mrb[0].mxu0
        %440 = vmatprep.mubr.f32.mxu0 0.0
        %441 = vmatmul.mubr.f32.gmra.mrb[0].mxu0 %v317
        %v442 = vpop.f32.mrb[0].mxu0
        %v443 = vadd.f32 0.0, %v442
        %v444 = vpop.f32.mrb[0].mxu0
        %445 = vmatprep.mubr.f32.mxu0 0.0
        %446 = vmatmul.mubr.f32.gmra.mrb[0].mxu0 %v320
        %v447 = vpop.f32.mrb[0].mxu0
        %v448 = vadd.f32 0.0, %v447
        %v449 = vpop.f32.mrb[0].mxu0
        %450 = vmatprep.mubr.f32.mxu0 0.0
        %451 = vmatmul.mubr.f32.gmra.mrb[0].mxu0 %v323
        %v452 = vpop.f32.mrb[0].mxu0
        %v453 = vadd.f32 0.0, %v452
        %v454 = vpop.f32.mrb[0].mxu0
        %455 = vmatprep.mubr.f32.mxu0 0.0
        %456 = vmatmul.mubr.f32.gmra.mrb[0].mxu0 %v326
        %v457 = vpop.f32.mrb[0].mxu0
        %v458 = vadd.f32 0.0, %v457
        %v459 = vpop.f32.mrb[0].mxu0
        %460 = vmatprep.mubr.f32.mxu0 0.0
        %461 = vmatmul.mubr.f32.gmra.mrb[0].mxu0 %v329
        %v462 = vpop.f32.mrb[0].mxu0
        %v463 = vadd.f32 0.0, %v462
        %v464 = vpop.f32.mrb[0].mxu0
        %465 = vmatprep.mubr.f32.mxu0 0.0
        %466 = vmatmul.mubr.f32.gmra.mrb[0].mxu0 %v332
        %v467 = vpop.f32.mrb[0].mxu0
        %v468 = vadd.f32 0.0, %v467
        %v469 = vpop.f32.mrb[0].mxu0
        %470 = vmatprep.mubr.f32.mxu0 0.0
        %471 = vmatmul.mubr.f32.gmra.mrb[0].mxu0 %v335
        %v472 = vpop.f32.mrb[0].mxu0
        %v473 = vadd.f32 0.0, %v472
        %v474 = vpop.f32.mrb[0].mxu0
        %475 = vmatprep.mubr.f32.mxu0 0.0
        %476 = vmatmul.mubr.f32.gmra.mrb[0].mxu0 %v338
        %v477 = vpop.f32.mrb[0].mxu0
        %v478 = vadd.f32 0.0, %v477
        %v479 = vpop.f32.mrb[0].mxu0
        %480 = vmatprep.mubr.f32.mxu0 0.0
        %481 = vmatmul.mubr.f32.gmra.mrb[0].mxu0 %v341
        %v482 = vpop.f32.mrb[0].mxu0
        %v483 = vadd.f32 0.0, %v482
        %v484 = vpop.f32.mrb[0].mxu0
        %485 = vmatprep.mubr.f32.mxu0 0.0
        %486 = vmatmul.mubr.f32.gmra.mrb[0].mxu0 %v344
        %v487 = vpop.f32.mrb[0].mxu0
        %v488 = vadd.f32 0.0, %v487
        %v489 = vpop.f32.mrb[0].mxu0
        %490 = vdwg.mxu0
        %v491 = vtanh.pop %v413
        %v492 = vtanh.pop %v418
        %v493 = vtanh.pop %v423
        %v494 = vtanh.pop %v428
        %v495 = vtanh.pop %v433
        %v496 = vtanh.pop %v438
        %v497 = vtanh.pop %v443
        %v498 = vtanh.pop %v448
        %v499 = vtanh.pop %v453
        %v500 = vtanh.pop %v458
        %v501 = vtanh.pop %v463
        %v502 = vtanh.pop %v468
        %v503 = vtanh.pop %v473
        %v504 = vtanh.pop %v478
        %v505 = vtanh.pop %v483
        %v506 = vtanh.pop %v488
        %v507 = vld [vmem:[%s250] sm:$0xff]
        %v508 = vld [vmem:[%s250 + $0x8] sm:$0xff]
        %v509 = vld [vmem:[%s250 + $0x10] sm:$0xff]
        %v510 = vld [vmem:[%s250 + $0x18] sm:$0xff]
        %v511 = vld [vmem:[%s250 + $0x20] sm:$0xff]
        %v512 = vld [vmem:[%s250 + $0x28] sm:$0xff]
        %v513 = vld [vmem:[%s250 + $0x30] sm:$0xff]
        %v514 = vld [vmem:[%s250 + $0x38] sm:$0xff]
        %v515 = vld [vmem:[%s250 + $0x40] sm:$0xff]
        %v516 = vld [vmem:[%s250 + $0x48] sm:$0xff]
        %v517 = vld [vmem:[%s250 + $0x50] sm:$0xff]
        %v518 = vld [vmem:[%s250 + $0x58] sm:$0xff]
        %v519 = vld [vmem:[%s250 + $0x60] sm:$0xff]
        %v520 = vld [vmem:[%s250 + $0x68] sm:$0xff]
        %v521 = vld [vmem:[%s250 + $0x70] sm:$0xff]
        %v522 = vld [vmem:[%s250 + $0x78] sm:$0xff]
        %v523 = vld [vmem:[%s203] sm:$0xff]
        %v524 = vld [vmem:[%s203 + $0x8] sm:$0xff]
        %v525 = vld [vmem:[%s203 + $0x10] sm:$0xff]
        %v526 = vld [vmem:[%s203 + $0x18] sm:$0xff]
        %v527 = vld [vmem:[%s203 + $0x20] sm:$0xff]
        %v528 = vld [vmem:[%s203 + $0x28] sm:$0xff]
        %v529 = vld [vmem:[%s203 + $0x30] sm:$0xff]
        %v530 = vld [vmem:[%s203 + $0x38] sm:$0xff]
        %v531 = vld [vmem:[%s203 + $0x40] sm:$0xff]
        %v532 = vld [vmem:[%s203 + $0x48] sm:$0xff]
        %v533 = vld [vmem:[%s203 + $0x50] sm:$0xff]
        %v534 = vld [vmem:[%s203 + $0x58] sm:$0xff]
        %v535 = vld [vmem:[%s203 + $0x60] sm:$0xff]
        %v536 = vld [vmem:[%s203 + $0x68] sm:$0xff]
        %v537 = vld [vmem:[%s203 + $0x70] sm:$0xff]
        %v538 = vld [vmem:[%s203 + $0x78] sm:$0xff]
        %539 = vmatprep.subr.mxu0 0.0
        %540 = vmatpush1.msra.mxu0 %v491
        %541 = vmatprep.subr.mxu0 0.0
        %542 = vmatpush1.msra.mxu0 %v492
        %543 = vmatprep.subr.mxu0 0.0
        %544 = vmatpush1.msra.mxu0 %v493
        %545 = vmatprep.subr.mxu0 0.0
        %546 = vmatpush1.msra.mxu0 %v494
        %547 = vmatprep.subr.mxu0 0.0
        %548 = vmatpush1.msra.mxu0 %v495
        %549 = vmatprep.subr.mxu0 0.0
        %550 = vmatpush1.msra.mxu0 %v496
        %551 = vmatprep.subr.mxu0 0.0
        %552 = vmatpush1.msra.mxu0 %v497
        %553 = vmatprep.subr.mxu0 0.0
        %554 = vmatpush1.msra.mxu0 %v498
        %555 = vmatprep.subr.mxu0 0.0
        %556 = vmatpush1.msra.mxu0 %v499
        %557 = vmatprep.subr.mxu0 0.0
        %558 = vmatpush1.msra.mxu0 %v500
        %559 = vmatprep.subr.mxu0 0.0
        %560 = vmatpush1.msra.mxu0 %v501
        %561 = vmatprep.subr.mxu0 0.0
        %562 = vmatpush1.msra.mxu0 %v502
        %563 = vmatprep.subr.mxu0 0.0
        %564 = vmatpush1.msra.mxu0 %v503
        %565 = vmatprep.subr.mxu0 0.0
        %566 = vmatpush1.msra.mxu0 %v504
        %567 = vmatprep.subr.mxu0 0.0
        %568 = vmatpush1.msra.mxu0 %v505
        %569 = vmatprep.subr.mxu0 0.0
        %570 = vmatpush1.msra.mxu0 %v506
        %571 = vmatprep.subr.mxu0 0.0
        %572 = vmatpush1.msra.mxu0 0.0
        %573 = vmatprep.subr.mxu0 0.0
        %574 = vmatpush1.msra.mxu0 0.0
        %575 = vmatprep.subr.mxu0 0.0
        %576 = vmatpush1.msra.mxu0 0.0
        %577 = vmatprep.subr.mxu0 0.0
        %578 = vmatpush1.msra.mxu0 0.0
        %579 = vmatprep.subr.mxu0 0.0
        %580 = vmatpush1.msra.mxu0 0.0
        %581 = vmatprep.subr.mxu0 0.0
        %582 = vmatpush1.msra.mxu0 0.0
        %583 = vmatprep.subr.mxu0 0.0
        %584 = vmatpush1.msra.mxu0 0.0
        %585 = vmatprep.subr.mxu0 0.0
        %586 = vmatpush1.msra.mxu0 0.0
        %587 = vmatprep.subr.mxu0 0.0
        %588 = vmatpush1.msra.mxu0 0.0
        %589 = vmatprep.subr.mxu0 0.0
        %590 = vmatpush1.msra.mxu0 0.0
        %591 = vmatprep.subr.mxu0 0.0
        %592 = vmatpush1.msra.mxu0 0.0
        %593 = vmatprep.subr.mxu0 0.0
        %594 = vmatpush1.msra.mxu0 0.0
        %595 = vmatprep.subr.mxu0 0.0
        %596 = vmatpush1.msra.mxu0 0.0
        %597 = vmatprep.subr.mxu0 0.0
        %598 = vmatpush1.msra.mxu0 0.0
        %599 = vmatprep.subr.mxu0 0.0
        %600 = vmatpush1.msra.mxu0 0.0
        %601 = vmatprep.subr.mxu0 0.0
        %602 = vmatpush1.msra.mxu0 0.0
        %603 = vmatprep.mubr.f32.mxu0 0.0
        %604 = vmatmul.mubr.f32.gmra.mrb[0].mxu0 %v523
        %v605 = vpop.f32.mrb[0].mxu0
        %v606 = vadd.f32 0.0, %v605
        %v607 = vpop.f32.mrb[0].mxu0
        %608 = vmatprep.mubr.f32.mxu0 0.0
        %609 = vmatmul.mubr.f32.gmra.mrb[0].mxu0 %v524
        %v610 = vpop.f32.mrb[0].mxu0
        %v611 = vadd.f32 0.0, %v610
        %v612 = vpop.f32.mrb[0].mxu0
        %613 = vmatprep.mubr.f32.mxu0 0.0
        %614 = vmatmul.mubr.f32.gmra.mrb[0].mxu0 %v525
        %v615 = vpop.f32.mrb[0].mxu0
        %v616 = vadd.f32 0.0, %v615
        %v617 = vpop.f32.mrb[0].mxu0
        %618 = vmatprep.mubr.f32.mxu0 0.0
        %619 = vmatmul.mubr.f32.gmra.mrb[0].mxu0 %v526
        %v620 = vpop.f32.mrb[0].mxu0
        %v621 = vadd.f32 0.0, %v620
        %v622 = vpop.f32.mrb[0].mxu0
        %623 = vmatprep.mubr.f32.mxu0 0.0
        %624 = vmatmul.mubr.f32.gmra.mrb[0].mxu0 %v527
        %v625 = vpop.f32.mrb[0].mxu0
        %v626 = vadd.f32 0.0, %v625
        %v627 = vpop.f32.mrb[0].mxu0
        %628 = vmatprep.mubr.f32.mxu0 0.0
        %629 = vmatmul.mubr.f32.gmra.mrb[0].mxu0 %v528
        %v630 = vpop.f32.mrb[0].mxu0
        %v631 = vadd.f32 0.0, %v630
        %v632 = vpop.f32.mrb[0].mxu0
        %633 = vmatprep.mubr.f32.mxu0 0.0
        %634 = vmatmul.mubr.f32.gmra.mrb[0].mxu0 %v529
        %v635 = vpop.f32.mrb[0].mxu0
        %v636 = vadd.f32 0.0, %v635
        %v637 = vpop.f32.mrb[0].mxu0
        %638 = vmatprep.mubr.f32.mxu0 0.0
        %639 = vmatmul.mubr.f32.gmra.mrb[0].mxu0 %v530
        %v640 = vpop.f32.mrb[0].mxu0
        %v641 = vadd.f32 0.0, %v640
        %v642 = vpop.f32.mrb[0].mxu0
        %643 = vmatprep.mubr.f32.mxu0 0.0
        %644 = vmatmul.mubr.f32.gmra.mrb[0].mxu0 %v531
        %v645 = vpop.f32.mrb[0].mxu0
        %v646 = vadd.f32 0.0, %v645
        %v647 = vpop.f32.mrb[0].mxu0
        %648 = vmatprep.mubr.f32.mxu0 0.0
        %649 = vmatmul.mubr.f32.gmra.mrb[0].mxu0 %v532
        %v650 = vpop.f32.mrb[0].mxu0
        %v651 = vadd.f32 0.0, %v650
        %v652 = vpop.f32.mrb[0].mxu0
        %653 = vmatprep.mubr.f32.mxu0 0.0
        %654 = vmatmul.mubr.f32.gmra.mrb[0].mxu0 %v533
        %v655 = vpop.f32.mrb[0].mxu0
        %v656 = vadd.f32 0.0, %v655
        %v657 = vpop.f32.mrb[0].mxu0
        %658 = vmatprep.mubr.f32.mxu0 0.0
        %659 = vmatmul.mubr.f32.gmra.mrb[0].mxu0 %v534
        %v660 = vpop.f32.mrb[0].mxu0
        %v661 = vadd.f32 0.0, %v660
        %v662 = vpop.f32.mrb[0].mxu0
        %663 = vmatprep.mubr.f32.mxu0 0.0
        %664 = vmatmul.mubr.f32.gmra.mrb[0].mxu0 %v535
        %v665 = vpop.f32.mrb[0].mxu0
        %v666 = vadd.f32 0.0, %v665
        %v667 = vpop.f32.mrb[0].mxu0
        %668 = vmatprep.mubr.f32.mxu0 0.0
        %669 = vmatmul.mubr.f32.gmra.mrb[0].mxu0 %v536
        %v670 = vpop.f32.mrb[0].mxu0
        %v671 = vadd.f32 0.0, %v670
        %v672 = vpop.f32.mrb[0].mxu0
        %673 = vmatprep.mubr.f32.mxu0 0.0
        %674 = vmatmul.mubr.f32.gmra.mrb[0].mxu0 %v537
        %v675 = vpop.f32.mrb[0].mxu0
        %v676 = vadd.f32 0.0, %v675
        %v677 = vpop.f32.mrb[0].mxu0
        %678 = vmatprep.mubr.f32.mxu0 0.0
        %679 = vmatmul.mubr.f32.gmra.mrb[0].mxu0 %v538
        %v680 = vpop.f32.mrb[0].mxu0
        %v681 = vadd.f32 0.0, %v680
        %v682 = vpop.f32.mrb[0].mxu0
        %683 = vdwg.mxu0
        %v684 = vadd.f32 %v507, %v606
        %v685 = vadd.f32 %v508, %v611
        %v686 = vadd.f32 %v509, %v616
        %v687 = vadd.f32 %v510, %v621
        %v688 = vadd.f32 %v511, %v626
        %v689 = vadd.f32 %v512, %v631
        %v690 = vadd.f32 %v513, %v636
        %v691 = vadd.f32 %v514, %v641
        %v692 = vadd.f32 %v515, %v646
        %v693 = vadd.f32 %v516, %v651
        %v694 = vadd.f32 %v517, %v656
        %v695 = vadd.f32 %v518, %v661
        %v696 = vadd.f32 %v519, %v666
        %v697 = vadd.f32 %v520, %v671
        %v698 = vadd.f32 %v521, %v676
        %v699 = vadd.f32 %v522, %v681
        %vm700 = vcmask 261120
        %701 = vst.msk [vmem:[%s250] sm:$0xff] %vm700, %v684
        %702 = vst.msk [vmem:[%s250 + $0x8] sm:$0xff] %vm700, %v685
        %703 = vst.msk [vmem:[%s250 + $0x10] sm:$0xff] %vm700, %v686
        %704 = vst.msk [vmem:[%s250 + $0x18] sm:$0xff] %vm700, %v687
        %705 = vst.msk [vmem:[%s250 + $0x20] sm:$0xff] %vm700, %v688
        %706 = vst.msk [vmem:[%s250 + $0x28] sm:$0xff] %vm700, %v689
        %707 = vst.msk [vmem:[%s250 + $0x30] sm:$0xff] %vm700, %v690
        %708 = vst.msk [vmem:[%s250 + $0x38] sm:$0xff] %vm700, %v691
        %709 = vst.msk [vmem:[%s250 + $0x40] sm:$0xff] %vm700, %v692
        %710 = vst.msk [vmem:[%s250 + $0x48] sm:$0xff] %vm700, %v693
        %711 = vst.msk [vmem:[%s250 + $0x50] sm:$0xff] %vm700, %v694
        %712 = vst.msk [vmem:[%s250 + $0x58] sm:$0xff] %vm700, %v695
        %713 = vst.msk [vmem:[%s250 + $0x60] sm:$0xff] %vm700, %v696
        %714 = vst.msk [vmem:[%s250 + $0x68] sm:$0xff] %vm700, %v697
        %715 = vst.msk [vmem:[%s250 + $0x70] sm:$0xff] %vm700, %v698
        %716 = vst.msk [vmem:[%s250 + $0x78] sm:$0xff] %vm700, %v699
        %s717 = smul.u32 16, %s23
        %p718 = scmp.lt.s32.totalorder %s22, 1
        %s719 = scalar_select %p718, %s22, 1
        %p720 = scmp.lt.s32.totalorder %s717, 47
        %s721 = scalar_select %p720, %s717, 47
        %s722 = smul.addr %s719, 48
        %s723 = sadd.s32 %s721, %s722
        %s724 = smul.addr %s723, 8
        %s725 = scalar_lea.vmem %s3, %s724
        // Predicated region
        $region41: #{tpu_custom_call.1} parent=31 // pred_check
          %p726 = pneg %p133
        $region42: #{tpu_custom_call.1} parent=31 // pred_check_branch
          %728 = sbr.rel (%p726) target = $region44
        $region43: #{tpu_custom_call.1} parent=31 // pred_region
          %s729 = smul.u32 16, %s23
        $region44: #{tpu_custom_call.1} parent=31 // pred_fallthru
          _
      $region32: #{tpu_custom_call.1} parent=5 // pred_fallthru
        _
      %p730 = scmp.le.s32.totalorder 2, %s12
      // Predicated region
      $region45: #{tpu_custom_call.1} parent=5 // pred_check
        %p731 = pneg %p730
      $region46: #{tpu_custom_call.1} parent=5 // pred_check_branch
        %733 = sbr.rel (%p731) target = $region48
      $region47: #{tpu_custom_call.1} parent=5 // pred_region
        %s734 = ssub.s32 %s12, 2
        // Predicated region
        $region49: #{tpu_custom_call.1} parent=47 // pred_check
          %p735 = pneg %p139
        $region50: #{tpu_custom_call.1} parent=47 // pred_check_branch
          %737 = sbr.rel (%p735) target = $region52
        $region51: #{tpu_custom_call.1} parent=47 // pred_region
          %s738 = smul.u32 16, %s26
          %p739 = scmp.lt.s32.totalorder %s25, 1
          %s740 = scalar_select %p739, %s25, 1
          %p741 = scmp.lt.s32.totalorder %s738, 47
          %s742 = scalar_select %p741, %s738, 47
          %s743 = smul.addr %s740, 48
          %s744 = sadd.s32 %s742, %s743
          %s745 = smul.addr %s744, 8
          %s746 = scalar_lea.vmem %s3, %s745
        $region52: #{tpu_custom_call.1} parent=47 // pred_fallthru
          _
      $region48: #{tpu_custom_call.1} parent=5 // pred_fallthru
        _
    $region6: #{tpu_custom_call.1} parent=1 // loop_footer
      %s16 = sadd.s32 1, %s12
    $region7: #{tpu_custom_call.1} parent=1 // loop_footer_branch
      %11 = sbr.rel target = $region3
    $region8: #{tpu_custom_call.1} parent=1 // loop_exit
      _
    %747 = vsyncpa [#allocation3], 1
    %s748 = scalar_lea.sflag [#allocation3], 1
    %749 = vsyncpa %s748, 1

</llo_original>
